<compile_context>
chip_gen: v6e
topology: v6e:2x2x1
jax: 0.10.0
libtpu: 0.0.40
codegen_flags: <defaults>
</compile_context>

<pallas_src>
import functools

import jax
import jax.numpy as jnp
from jax.experimental import pallas as pl
from jax.experimental.pallas import tpu as pltpu


def _round_up(x, m):
    return (x + m - 1) // m * m


def _tpu_vmem_capacity_bytes():
    try:
        return int(pltpu.get_tpu_info().vmem_capacity_bytes)
    except Exception:
        return 64 * 1024 * 1024  # conservative fallback (v7x per-TC VMEM)


def _table_lse_kernel(table_ref, lse_ref, *, n_vocab):
    """Per-table-row log-sum-exp over the first n_vocab (real) columns."""
    t = table_ref[...]                                           # (tile_v, V_pad)
    col = jax.lax.broadcasted_iota(jnp.int32, t.shape, 1)
    tm = jnp.where(col < n_vocab, t, -jnp.inf)                   # mask pad cols
    row_max = jnp.max(tm, axis=-1, keepdims=True)
    lse_ref[...] = jnp.log(jnp.sum(jnp.exp(tm - row_max), axis=-1,
                                   keepdims=True)) + row_max     # (tile_v, 1)


def _bigram_loss_kernel(idx_ref, tgt_ref, table_ref, lse_ref,
                        logits_ref, nll_ref, *, n_valid):
    i = pl.program_id(0)
    tile_n = idx_ref.shape[0]
    v_pad = table_ref.shape[1]

    idx = idx_ref[...]                                           # (tile_n, 1)
    tgt = tgt_ref[...]                                           # (tile_n, 1)
    col = jax.lax.broadcasted_iota(jnp.int32, (tile_n, v_pad), 1)

    # Embedding lookup as a one-hot matmul on the MXU (fine at small V).
    one_hot = (col == idx).astype(jnp.float32)
    logits = jnp.dot(one_hot, table_ref[...],
                     preferred_element_type=jnp.float32)         # (tile_n, v_pad)
    logits_ref[...] = logits

    # LSE depends only on the table row picked by idx: gather it from the
    # precomputed (1, V_pad) LSE vector with a masked reduce (no per-token
    # exp/log).  Target logit gathered from the already-computed logits tile.
    lse_tok = jnp.sum(jnp.where(col == idx, lse_ref[...], 0.0),
                      axis=-1, keepdims=True)                    # (tile_n, 1)
    tgt_logit = jnp.sum(jnp.where(col == tgt, logits, 0.0),
                        axis=-1, keepdims=True)                  # (tile_n, 1)

    # Per-row NLL partial output; padded rows (>= n_valid) contribute exactly 0.
    # No cross-step carry, so the grid axis is "parallel" (both v7x TCs).
    row_ids = i * tile_n + jax.lax.broadcasted_iota(jnp.int32, (tile_n, 1), 0)
    nll_ref[...] = jnp.where(row_ids < n_valid, lse_tok - tgt_logit, 0.0)


def _bigram_logits_kernel(idx_ref, table_ref, logits_ref):
    tile_n = idx_ref.shape[0]
    v_pad = table_ref.shape[1]
    col = jax.lax.broadcasted_iota(jnp.int32, (tile_n, v_pad), 1)
    one_hot = (col == idx_ref[...]).astype(jnp.float32)
    logits_ref[...] = jnp.dot(one_hot, table_ref[...],
                              preferred_element_type=jnp.float32)


@functools.partial(jax.jit, static_argnames=("vocab_size", "with_loss"))
def _forward_impl(idx, table_p, targets, vocab_size, with_loss):
    B, T = idx.shape
    V = vocab_size
    V_pad = table_p.shape[1]
    N = B * T

    table_bytes = V_pad * V_pad * 4
    cap = _tpu_vmem_capacity_bytes()
    budget = int(cap * 0.78)           # ~100 MiB on v5e/v6e, ~50 MiB on v7x

    def working_set(tn):
        # Resident table (conservatively x2) + double-buffered logits / nll /
        # idx / tgt tiles (narrow int32 blocks pad to 128 lanes in VMEM) + slack.
        return (2 * table_bytes + 2 * tn * V_pad * 4
                + 6 * tn * 128 * 4 + V_pad * 4 + (1 << 20))

    # Large row tiles amortize per-grid-step overhead; shrink only if VMEM-bound.
    tile_n = min(2048, _round_up(N, 8))
    while tile_n > 8 and working_set(tile_n) > budget:
        tile_n = max(8, tile_n // 2)
    N_pad = _round_up(N, tile_n)
    num_tiles = N_pad // tile_n

    vmem_limit = int(min(budget, max(16 * 1024 * 1024, working_set(tile_n))))

    idx_p = jnp.pad(idx.reshape(N).astype(jnp.int32),
                    (0, N_pad - N)).reshape(N_pad, 1)

    row_spec = pl.BlockSpec((tile_n, 1), lambda i: (i, 0))
    table_spec = pl.BlockSpec((V_pad, V_pad), lambda i: (0, 0))   # VMEM-resident
    logits_spec = pl.BlockSpec((tile_n, V_pad), lambda i: (i, 0))

    cost = pl.CostEstimate(
        flops=2 * N_pad * V_pad * V_pad,
        transcendentals=0,
        bytes_accessed=N_pad * V_pad * 4 + table_bytes + 3 * N_pad * 4,
    )
    cparams = pltpu.CompilerParams(dimension_semantics=("parallel",),
                                   vmem_limit_bytes=vmem_limit)

    if not with_loss:
        logits_flat = pl.pallas_call(
            _bigram_logits_kernel,
            out_shape=jax.ShapeDtypeStruct((N_pad, V_pad), jnp.float32),
            grid=(num_tiles,),
            in_specs=[row_spec, table_spec],
            out_specs=logits_spec,
            compiler_params=cparams,
            cost_estimate=cost,
        )(idx_p, table_p)
        # TODO(synk): returning the padded buffer (and slicing at the consumer)
        # would avoid materializing this second copy of the logits.
        return logits_flat[:N, :V].reshape(B, T, V), None

    # Once-per-call table LSE: one pass over the V table rows replaces the
    # per-token exp/log (work shrinks by ~N/V).
    lse_col = pl.pallas_call(
        functools.partial(_table_lse_kernel, n_vocab=V),
        out_shape=jax.ShapeDtypeStruct((V_pad, 1), jnp.float32),
        grid=(V_pad // 128,),
        in_specs=[pl.BlockSpec((128, V_pad), lambda i: (i, 0))],
        out_specs=pl.BlockSpec((128, 1), lambda i: (i, 0)),
        compiler_params=cparams,
    )(table_p)
    lse_row = lse_col.reshape(1, V_pad)

    tgt_p = jnp.pad(targets.reshape(N).astype(jnp.int32),
                    (0, N_pad - N)).reshape(N_pad, 1)
    lse_spec = pl.BlockSpec((1, V_pad), lambda i: (0, 0))         # VMEM-resident
    nll_spec = pl.BlockSpec((tile_n, 1), lambda i: (i, 0))

    logits_flat, nll = pl.pallas_call(
        functools.partial(_bigram_loss_kernel, n_valid=N),
        out_shape=(jax.ShapeDtypeStruct((N_pad, V_pad), jnp.float32),
                   jax.ShapeDtypeStruct((N_pad, 1), jnp.float32)),
        grid=(num_tiles,),
        in_specs=[row_spec, row_spec, table_spec, lse_spec],
        out_specs=(logits_spec, nll_spec),
        compiler_params=cparams,
        cost_estimate=cost,
    )(idx_p, tgt_p, table_p, lse_row)

    # Mean cross-entropy (== F.cross_entropy); padded rows contribute exactly 0.
    loss = jnp.sum(nll) * (1.0 / N)
    # PyTorch returns the flattened (B*T, C) logits when targets are given.
    return logits_flat[:N, :V], loss


class BigramLanguageModel:
    def __init__(self, vocab_size, key):
        # nn.Embedding default init: N(0, 1).
        self.vocab_size = vocab_size
        self.table = jax.random.normal(key, (vocab_size, vocab_size),
                                       dtype=jnp.float32)
        # Pre-pad once at init (perf review): plain zero padding; padded
        # columns are masked inside the LSE kernel and sliced off the logits,
        # padded rows are never indexed (idx < vocab_size).
        v_pad = _round_up(vocab_size, 128)
        self.table_padded = jnp.pad(
            self.table, ((0, v_pad - vocab_size), (0, v_pad - vocab_size)))

    def forward(self, idx, targets=None):
        if targets is None:
            return _forward_impl(idx, self.table_padded, idx,
                                 vocab_size=self.vocab_size, with_loss=False)
        return _forward_impl(idx, self.table_padded, targets,
                             vocab_size=self.vocab_size, with_loss=True)

    # TODO(synk): generate() uses torch.multinomial sampling in a Python loop;
    # sampling loop kept out of the kernel (not a hot-path TPU op).


def _reference(idx, table, targets):
    logits = table[idx]                                   # (B, T, V)
    B, T, V = logits.shape
    lf = logits.reshape(B * T, V)
    tf = targets.reshape(B * T)
    lse = jax.scipy.special.logsumexp(lf, axis=-1)
    nll = lse - jnp.take_along_axis(lf, tf[:, None], axis=-1)[:, 0]
    return lf, jnp.mean(nll)


if __name__ == "__main__":
    key = jax.random.PRNGKey(0)
    k_tab, k_idx, k_tgt = jax.random.split(key, 3)

    vocab_size = 65
    B, T = 2, 8

    model = BigramLanguageModel(vocab_size, k_tab)
    idx = jax.random.randint(k_idx, (B, T), 0, vocab_size, dtype=jnp.int32)
    targets = jax.random.randint(k_tgt, (B, T), 0, vocab_size, dtype=jnp.int32)

    # With targets: (B*T, C) logits + scalar mean cross-entropy loss.
    logits, loss = model.forward(idx, targets)
    logits = jax.block_until_ready(logits)
    loss = jax.block_until_ready(loss)

    # Without targets: (B, T, C) logits, loss is None.
    logits_only, loss_none = model.forward(idx)
    logits_only = jax.block_until_ready(logits_only)
    assert loss_none is None
    assert logits_only.shape == (B, T, vocab_size)

    # Check against pure-JAX reference.
    ref_logits, ref_loss = _reference(idx, model.table, targets)
    assert logits.shape == (B * T, vocab_size)
    assert jnp.allclose(logits, ref_logits, atol=1e-5, rtol=1e-5)
    assert jnp.allclose(loss, ref_loss, atol=1e-5, rtol=1e-5)
    assert jnp.allclose(logits_only.reshape(B * T, vocab_size), ref_logits,
                        atol=1e-5, rtol=1e-5)

    print("KERNEL_OK")
</pallas_src>

<mosaic_0001>
module attributes {stable_mosaic.version = 11 : i64} {
  func.func @_table_lse_kernel(%arg0: i32, %arg1: memref<128x128xf32, #tpu.memory_space<vmem>>, %arg2: memref<128x1xf32, #tpu.memory_space<vmem>>) attributes {dimension_semantics = [#tpu.dimension_semantics<parallel>], iteration_bounds = array<i64: 1>, scalar_prefetch = 0 : i64, scratch_operands = 0 : i64, tpu.core_type = #tpu.core_type<tc>, window_params = [{transform_indices = @transform_0, window_bounds = array<i64: 128, 128>}, {transform_indices = @transform_1, window_bounds = array<i64: 128, 1>}]} {
    %c0 = arith.constant 0 : index
    %c0_0 = arith.constant 0 : index
    %0 = vector.load %arg1[%c0, %c0_0] : memref<128x128xf32, #tpu.memory_space<vmem>>, vector<128x128xf32>
    %1 = tpu.iota {dimensions = array<i32: 1>} : vector<128x128xi32>
    %c65_i32 = arith.constant 65 : i32
    %2 = vector.broadcast %c65_i32 : i32 to vector<128x128xi32>
    %3 = arith.cmpi slt, %1, %2 : vector<128x128xi32>
    %cst = arith.constant 0xFF800000 : f32
    %4 = vector.broadcast %cst : f32 to vector<128x128xf32>
    %5 = arith.select %3, %0, %4 : vector<128x128xi1>, vector<128x128xf32>
    %cst_1 = arith.constant dense<0xFF800000> : vector<128xf32>
    %6 = vector.multi_reduction <maximumf>, %5, %cst_1 [1] : vector<128x128xf32> to vector<128xf32>
    %7 = vector.shape_cast %6 : vector<128xf32> to vector<128x1xf32>
    %8 = vector.broadcast %7 : vector<128x1xf32> to vector<128x128xf32>
    %9 = arith.subf %5, %8 : vector<128x128xf32>
    %10 = math.exp %9 : vector<128x128xf32>
    %cst_2 = arith.constant dense<0.000000e+00> : vector<128xf32>
    %11 = vector.multi_reduction <add>, %10, %cst_2 [1] : vector<128x128xf32> to vector<128xf32>
    %12 = vector.shape_cast %11 : vector<128xf32> to vector<128x1xf32>
    %13 = math.log %12 : vector<128x1xf32>
    %14 = arith.addf %13, %7 : vector<128x1xf32>
    %c0_3 = arith.constant 0 : index
    %c0_4 = arith.constant 0 : index
    %15 = vector.load %arg2[%c0_3, %c0_4] : memref<128x1xf32, #tpu.memory_space<vmem>>, vector<128x1xf32>
    tpu.vector_store %arg2[%c0_3, %c0_4], %14 {strides = array<i32>} : memref<128x1xf32, #tpu.memory_space<vmem>>, vector<128x1xf32>,
    return
  }
  func.func @transform_0(%arg0: i32) -> (i32, i32) {
    %c0_i32 = arith.constant 0 : i32
    %c0_i32_0 = arith.constant 0 : i32
    return %arg0, %c0_i32 : i32, i32
  }
  func.func @transform_1(%arg0: i32) -> (i32, i32) {
    %c0_i32 = arith.constant 0 : i32
    %c0_i32_0 = arith.constant 0 : i32
    return %arg0, %c0_i32 : i32, i32
  }
}

module attributes {stable_mosaic.version = 11 : i64} {
  func.func @_bigram_loss_kernel(%arg0: i32, %arg1: memref<16x1xi32, #tpu.memory_space<vmem>>, %arg2: memref<16x1xi32, #tpu.memory_space<vmem>>, %arg3: memref<128x128xf32, #tpu.memory_space<vmem>>, %arg4: memref<1x128xf32, #tpu.memory_space<vmem>>, %arg5: memref<16x128xf32, #tpu.memory_space<vmem>>, %arg6: memref<16x1xf32, #tpu.memory_space<vmem>>) attributes {dimension_semantics = [#tpu.dimension_semantics<parallel>], iteration_bounds = array<i64: 1>, scalar_prefetch = 0 : i64, scratch_operands = 0 : i64, tpu.core_type = #tpu.core_type<tc>, window_params = [{transform_indices = @transform_0, window_bounds = array<i64: 16, 1>}, {transform_indices = @transform_1, window_bounds = array<i64: 16, 1>}, {pipeline_mode = #tpu.pipeline_mode<synchronous>, transform_indices = @transform_2, window_bounds = array<i64: 128, 128>}, {pipeline_mode = #tpu.pipeline_mode<synchronous>, transform_indices = @transform_3, window_bounds = array<i64: 1, 128>}, {transform_indices = @transform_4, window_bounds = array<i64: 16, 128>}, {transform_indices = @transform_5, window_bounds = array<i64: 16, 1>}]} {
    %c0 = arith.constant 0 : index
    %c0_0 = arith.constant 0 : index
    %0 = vector.load %arg1[%c0, %c0_0] : memref<16x1xi32, #tpu.memory_space<vmem>>, vector<16x1xi32>
    %c0_1 = arith.constant 0 : index
    %c0_2 = arith.constant 0 : index
    %1 = vector.load %arg2[%c0_1, %c0_2] : memref<16x1xi32, #tpu.memory_space<vmem>>, vector<16x1xi32>
    %2 = tpu.iota {dimensions = array<i32: 1>} : vector<16x128xi32>
    %3 = vector.broadcast %0 : vector<16x1xi32> to vector<16x128xi32>
    %4 = arith.cmpi eq, %2, %3 : vector<16x128xi32>
    %5 = arith.extui %4 : vector<16x128xi1> to vector<16x128xi32>
    %6 = arith.sitofp %5 : vector<16x128xi32> to vector<16x128xf32>
    %c0_3 = arith.constant 0 : index
    %c0_4 = arith.constant 0 : index
    %7 = vector.load %arg3[%c0_3, %c0_4] : memref<128x128xf32, #tpu.memory_space<vmem>>, vector<128x128xf32>
    %cst = arith.constant dense<0.000000e+00> : vector<16x128xf32>
    %8 = tpu.matmul %6, %7, %cst {dimension_numbers = #tpu.dot_dimension_numbers<[1], [0], [0], [1], [0, 0, 1, 1], [], []>} : vector<16x128xf32>, vector<128x128xf32>, vector<16x128xf32> -> vector<16x128xf32>
    %c0_5 = arith.constant 0 : index
    %c0_6 = arith.constant 0 : index
    %9 = vector.load %arg5[%c0_5, %c0_6] : memref<16x128xf32, #tpu.memory_space<vmem>>, vector<16x128xf32>
    tpu.vector_store %arg5[%c0_5, %c0_6], %8 {strides = array<i32>} : memref<16x128xf32, #tpu.memory_space<vmem>>, vector<16x128xf32>,
    %10 = vector.broadcast %0 : vector<16x1xi32> to vector<16x128xi32>
    %11 = arith.cmpi eq, %2, %10 : vector<16x128xi32>
    %c0_7 = arith.constant 0 : index
    %c0_8 = arith.constant 0 : index
    %12 = vector.load %arg4[%c0_7, %c0_8] : memref<1x128xf32, #tpu.memory_space<vmem>>, vector<1x128xf32>
    %cst_9 = arith.constant 0.000000e+00 : f32
    %13 = vector.shape_cast %12 : vector<1x128xf32> to vector<1x128xf32>
    %14 = vector.broadcast %13 : vector<1x128xf32> to vector<16x128xf32>
    %15 = vector.broadcast %cst_9 : f32 to vector<16x128xf32>
    %16 = arith.select %11, %14, %15 : vector<16x128xi1>, vector<16x128xf32>
    %cst_10 = arith.constant dense<0.000000e+00> : vector<16xf32>
    %17 = vector.multi_reduction <add>, %16, %cst_10 [1] : vector<16x128xf32> to vector<16xf32>
    %18 = vector.shape_cast %17 : vector<16xf32> to vector<16x1xf32>
    %19 = vector.broadcast %1 : vector<16x1xi32> to vector<16x128xi32>
    %20 = arith.cmpi eq, %2, %19 : vector<16x128xi32>
    %cst_11 = arith.constant 0.000000e+00 : f32
    %21 = vector.broadcast %cst_11 : f32 to vector<16x128xf32>
    %22 = arith.select %20, %8, %21 : vector<16x128xi1>, vector<16x128xf32>
    %cst_12 = arith.constant dense<0.000000e+00> : vector<16xf32>
    %23 = vector.multi_reduction <add>, %22, %cst_12 [1] : vector<16x128xf32> to vector<16xf32>
    %24 = vector.shape_cast %23 : vector<16xf32> to vector<16x1xf32>
    %c16_i32 = arith.constant 16 : i32
    %25 = arith.muli %arg0, %c16_i32 : i32
    %26 = tpu.iota {dimensions = array<i32: 0>} : vector<16x1xi32>
    %27 = vector.broadcast %25 : i32 to vector<16x1xi32>
    %28 = arith.addi %27, %26 : vector<16x1xi32>
    %c16_i32_13 = arith.constant 16 : i32
    %29 = vector.broadcast %c16_i32_13 : i32 to vector<16x1xi32>
    %30 = arith.cmpi slt, %28, %29 : vector<16x1xi32>
    %31 = arith.subf %18, %24 : vector<16x1xf32>
    %cst_14 = arith.constant 0.000000e+00 : f32
    %32 = vector.broadcast %cst_14 : f32 to vector<16x1xf32>
    %33 = arith.select %30, %31, %32 : vector<16x1xi1>, vector<16x1xf32>
    %c0_15 = arith.constant 0 : index
    %c0_16 = arith.constant 0 : index
    %34 = vector.load %arg6[%c0_15, %c0_16] : memref<16x1xf32, #tpu.memory_space<vmem>>, vector<16x1xf32>
    tpu.vector_store %arg6[%c0_15, %c0_16], %33 {strides = array<i32>} : memref<16x1xf32, #tpu.memory_space<vmem>>, vector<16x1xf32>,
    return
  }
  func.func @transform_0(%arg0: i32) -> (i32, i32) {
    %c0_i32 = arith.constant 0 : i32
    %c0_i32_0 = arith.constant 0 : i32
    return %arg0, %c0_i32 : i32, i32
  }
  func.func @transform_1(%arg0: i32) -> (i32, i32) {
    %c0_i32 = arith.constant 0 : i32
    %c0_i32_0 = arith.constant 0 : i32
    return %arg0, %c0_i32 : i32, i32
  }
  func.func @transform_2(%arg0: i32) -> (i32, i32) {
    %c0_i32 = arith.constant 0 : i32
    %c0_i32_0 = arith.constant 0 : i32
    %c0_i32_1 = arith.constant 0 : i32
    return %c0_i32, %c0_i32_0 : i32, i32
  }
  func.func @transform_3(%arg0: i32) -> (i32, i32) {
    %c0_i32 = arith.constant 0 : i32
    %c0_i32_0 = arith.constant 0 : i32
    %c0_i32_1 = arith.constant 0 : i32
    return %c0_i32, %c0_i32_0 : i32, i32
  }
  func.func @transform_4(%arg0: i32) -> (i32, i32) {
    %c0_i32 = arith.constant 0 : i32
    %c0_i32_0 = arith.constant 0 : i32
    return %arg0, %c0_i32 : i32, i32
  }
  func.func @transform_5(%arg0: i32) -> (i32, i32) {
    %c0_i32 = arith.constant 0 : i32
    %c0_i32_0 = arith.constant 0 : i32
    return %arg0, %c0_i32 : i32, i32
  }
}

</mosaic_0001>

<llo_original>
// kernel: _forward_impl.2
$region0: #{_forward_impl.2}
  #allocation0 [shape = 'u32[]', space=smem, size = 0x4, offset = 0x4, fixed_abs, tag = 'smem constant byte address 0x4 - core index']
  #allocation1 [shape = 'u32[144,128]{1,0:T(1,128)}', space=vmem, size = 0x12000, scoped, tag = 'internal scratch']
  %s0 = inlined_call_operand.hbm [shape: f32[128,128], index: 0, kind: input, shape index: {}]
  %s1 = inlined_call_operand.vmem [shape: f32[128,1], index: 1, kind: output, shape index: {}]
  %s2 = sld [smem:[#allocation0]]
  $region18: #{_forward_impl.2} parent=0
    _
  %s4 = ssub.s32 1, %s2
  %s5 = scalar_select 0, %s4, %s2
  $region1: #{_forward_impl.2} parent=0
    #allocation2 [shape = 'u8[65536]{0}', space=vmem, size = 0x10000, scoped, tag = 'input window, operand 0, single buffered']
    #allocation3 [shape = 's32[1]{0}', space=sflag, size = 0x4, scoped, tag = 'scoped memory for _forward_impl.2']
    %6 = vsyncpa [#allocation3], 0
    // Predicated region
    $region2: #{_forward_impl.2} parent=1 // pred_check
      _
    $region3: #{_forward_impl.2} parent=1 // pred_check_branch
      %8 = sbr.rel (0) target = $region5
    $region4: #{_forward_impl.2} parent=1 // pred_region
      %s10 = ssub.s32 2048, 2048
      %11 = vsyncadd [#allocation3], %s10
      %s12 = sshll.u32 [#allocation2], 4
      %s13 = int_to_ptr.vmem [resolvable:$true] %s12
      %18 = dma.hbm_to_vmem [thread:$0]  %s0, 2048, %s13, [#allocation3], 128, 128, 8
    $region5: #{_forward_impl.2} parent=1 // pred_fallthru
      _
    // Predicated region
    $region6: #{_forward_impl.2} parent=1 // pred_check
      _
    $region7: #{_forward_impl.2} parent=1 // pred_check_branch
      %20 = sbr.rel (0) target = $region9
    $region8: #{_forward_impl.2} parent=1 // pred_region
      %21 = dma.done [#allocation3], 2048
    $region9: #{_forward_impl.2} parent=1 // pred_fallthru
      _
    %v22 = vld [vmem:[#allocation2] sm:$0xff]
    %v23 = vld [vmem:[#allocation2 + $0x8] sm:$0xff]
    %v24 = vld [vmem:[#allocation2 + $0x10] sm:$0xff]
    %v25 = vld [vmem:[#allocation2 + $0x18] sm:$0xff]
    %v26 = vld [vmem:[#allocation2 + $0x20] sm:$0xff]
    %v27 = vld [vmem:[#allocation2 + $0x28] sm:$0xff]
    %v28 = vld [vmem:[#allocation2 + $0x30] sm:$0xff]
    %v29 = vld [vmem:[#allocation2 + $0x38] sm:$0xff]
    %v30 = vld [vmem:[#allocation2 + $0x40] sm:$0xff]
    %v31 = vld [vmem:[#allocation2 + $0x48] sm:$0xff]
    %v32 = vld [vmem:[#allocation2 + $0x50] sm:$0xff]
    %v33 = vld [vmem:[#allocation2 + $0x58] sm:$0xff]
    %v34 = vld [vmem:[#allocation2 + $0x60] sm:$0xff]
    %v35 = vld [vmem:[#allocation2 + $0x68] sm:$0xff]
    %v36 = vld [vmem:[#allocation2 + $0x70] sm:$0xff]
    %v37 = vld [vmem:[#allocation2 + $0x78] sm:$0xff]
    %v38 = vlaneseq
    %v39 = vand.u32 %v38, 127
    %vm40 = vcmp.lt.s32.totalorder %v39, 65
    %v41 = vsel %vm40, %v22, -inf
    %v42 = vsel %vm40, %v23, -inf
    %v43 = vsel %vm40, %v24, -inf
    %v44 = vsel %vm40, %v25, -inf
    %v45 = vsel %vm40, %v26, -inf
    %v46 = vsel %vm40, %v27, -inf
    %v47 = vsel %vm40, %v28, -inf
    %v48 = vsel %vm40, %v29, -inf
    %v49 = vsel %vm40, %v30, -inf
    %v50 = vsel %vm40, %v31, -inf
    %v51 = vsel %vm40, %v32, -inf
    %v52 = vsel %vm40, %v33, -inf
    %v53 = vsel %vm40, %v34, -inf
    %v54 = vsel %vm40, %v35, -inf
    %v55 = vsel %vm40, %v36, -inf
    %v56 = vsel %vm40, %v37, -inf
    %57 = vmax.xlane.f32.xlu0 %v41
    %v58 = vpop.xlane.xlu0 %57
    %59 = vmax.xlane.f32.xlu0 %v42
    %v60 = vpop.xlane.xlu0 %59
    %61 = vmax.xlane.f32.xlu0 %v43
    %v62 = vpop.xlane.xlu0 %61
    %63 = vmax.xlane.f32.xlu0 %v44
    %v64 = vpop.xlane.xlu0 %63
    %65 = vmax.xlane.f32.xlu0 %v45
    %v66 = vpop.xlane.xlu0 %65
    %67 = vmax.xlane.f32.xlu0 %v46
    %v68 = vpop.xlane.xlu0 %67
    %69 = vmax.xlane.f32.xlu0 %v47
    %v70 = vpop.xlane.xlu0 %69
    %71 = vmax.xlane.f32.xlu0 %v48
    %v72 = vpop.xlane.xlu0 %71
    %73 = vmax.xlane.f32.xlu0 %v49
    %v74 = vpop.xlane.xlu0 %73
    %75 = vmax.xlane.f32.xlu0 %v50
    %v76 = vpop.xlane.xlu0 %75
    %77 = vmax.xlane.f32.xlu0 %v51
    %v78 = vpop.xlane.xlu0 %77
    %79 = vmax.xlane.f32.xlu0 %v52
    %v80 = vpop.xlane.xlu0 %79
    %81 = vmax.xlane.f32.xlu0 %v53
    %v82 = vpop.xlane.xlu0 %81
    %83 = vmax.xlane.f32.xlu0 %v54
    %v84 = vpop.xlane.xlu0 %83
    %85 = vmax.xlane.f32.xlu0 %v55
    %v86 = vpop.xlane.xlu0 %85
    %87 = vmax.xlane.f32.xlu0 %v56
    %v88 = vpop.xlane.xlu0 %87
    %v89 = vsub.f32 %v41, %v58
    %v90 = vsub.f32 %v42, %v60
    %v91 = vsub.f32 %v43, %v62
    %v92 = vsub.f32 %v44, %v64
    %v93 = vsub.f32 %v45, %v66
    %v94 = vsub.f32 %v46, %v68
    %v95 = vsub.f32 %v47, %v70
    %v96 = vsub.f32 %v48, %v72
    %v97 = vsub.f32 %v49, %v74
    %v98 = vsub.f32 %v50, %v76
    %v99 = vsub.f32 %v51, %v78
    %v100 = vsub.f32 %v52, %v80
    %v101 = vsub.f32 %v53, %v82
    %v102 = vsub.f32 %v54, %v84
    %v103 = vsub.f32 %v55, %v86
    %v104 = vsub.f32 %v56, %v88
    %v105 = vmul.f32 %v89, 1.442695
    %v106 = vpow.pop %v105
    %v107 = vmul.f32 %v90, 1.442695
    %v108 = vpow.pop %v107
    %v109 = vmul.f32 %v91, 1.442695
    %v110 = vpow.pop %v109
    %v111 = vmul.f32 %v92, 1.442695
    %v112 = vpow.pop %v111
    %v113 = vmul.f32 %v93, 1.442695
    %v114 = vpow.pop %v113
    %v115 = vmul.f32 %v94, 1.442695
    %v116 = vpow.pop %v115
    %v117 = vmul.f32 %v95, 1.442695
    %v118 = vpow.pop %v117
    %v119 = vmul.f32 %v96, 1.442695
    %v120 = vpow.pop %v119
    %v121 = vmul.f32 %v97, 1.442695
    %v122 = vpow.pop %v121
    %v123 = vmul.f32 %v98, 1.442695
    %v124 = vpow.pop %v123
    %v125 = vmul.f32 %v99, 1.442695
    %v126 = vpow.pop %v125
    %v127 = vmul.f32 %v100, 1.442695
    %v128 = vpow.pop %v127
    %v129 = vmul.f32 %v101, 1.442695
    %v130 = vpow.pop %v129
    %v131 = vmul.f32 %v102, 1.442695
    %v132 = vpow.pop %v131
    %v133 = vmul.f32 %v103, 1.442695
    %v134 = vpow.pop %v133
    %v135 = vmul.f32 %v104, 1.442695
    %v136 = vpow.pop %v135
    %137 = vadd.xlane.f32.xlu0 %v106
    %v138 = vpop.xlane.xlu0 %137
    %139 = vadd.xlane.f32.xlu0 %v108
    %v140 = vpop.xlane.xlu0 %139
    %141 = vadd.xlane.f32.xlu0 %v110
    %v142 = vpop.xlane.xlu0 %141
    %143 = vadd.xlane.f32.xlu0 %v112
    %v144 = vpop.xlane.xlu0 %143
    %145 = vadd.xlane.f32.xlu0 %v114
    %v146 = vpop.xlane.xlu0 %145
    %147 = vadd.xlane.f32.xlu0 %v116
    %v148 = vpop.xlane.xlu0 %147
    %149 = vadd.xlane.f32.xlu0 %v118
    %v150 = vpop.xlane.xlu0 %149
    %151 = vadd.xlane.f32.xlu0 %v120
    %v152 = vpop.xlane.xlu0 %151
    %153 = vadd.xlane.f32.xlu0 %v122
    %v154 = vpop.xlane.xlu0 %153
    %155 = vadd.xlane.f32.xlu0 %v124
    %v156 = vpop.xlane.xlu0 %155
    %157 = vadd.xlane.f32.xlu0 %v126
    %v158 = vpop.xlane.xlu0 %157
    %159 = vadd.xlane.f32.xlu0 %v128
    %v160 = vpop.xlane.xlu0 %159
    %161 = vadd.xlane.f32.xlu0 %v130
    %v162 = vpop.xlane.xlu0 %161
    %163 = vadd.xlane.f32.xlu0 %v132
    %v164 = vpop.xlane.xlu0 %163
    %165 = vadd.xlane.f32.xlu0 %v134
    %v166 = vpop.xlane.xlu0 %165
    %167 = vadd.xlane.f32.xlu0 %v136
    %v168 = vpop.xlane.xlu0 %167
    %v169 = vlog2.pop %v138
    %v170 = vmul.f32 %v169, 0.6931472
    %v171 = vlog2.pop %v140
    %v172 = vmul.f32 %v171, 0.6931472
    %v173 = vlog2.pop %v142
    %v174 = vmul.f32 %v173, 0.6931472
    %v175 = vlog2.pop %v144
    %v176 = vmul.f32 %v175, 0.6931472
    %v177 = vlog2.pop %v146
    %v178 = vmul.f32 %v177, 0.6931472
    %v179 = vlog2.pop %v148
    %v180 = vmul.f32 %v179, 0.6931472
    %v181 = vlog2.pop %v150
    %v182 = vmul.f32 %v181, 0.6931472
    %v183 = vlog2.pop %v152
    %v184 = vmul.f32 %v183, 0.6931472
    %v185 = vlog2.pop %v154
    %v186 = vmul.f32 %v185, 0.6931472
    %v187 = vlog2.pop %v156
    %v188 = vmul.f32 %v187, 0.6931472
    %v189 = vlog2.pop %v158
    %v190 = vmul.f32 %v189, 0.6931472
    %v191 = vlog2.pop %v160
    %v192 = vmul.f32 %v191, 0.6931472
    %v193 = vlog2.pop %v162
    %v194 = vmul.f32 %v193, 0.6931472
    %v195 = vlog2.pop %v164
    %v196 = vmul.f32 %v195, 0.6931472
    %v197 = vlog2.pop %v166
    %v198 = vmul.f32 %v197, 0.6931472
    %v199 = vlog2.pop %v168
    %v200 = vmul.f32 %v199, 0.6931472
    %v201 = vadd.f32 %v170, %v58
    %v202 = vadd.f32 %v172, %v60
    %v203 = vadd.f32 %v174, %v62
    %v204 = vadd.f32 %v176, %v64
    %v205 = vadd.f32 %v178, %v66
    %v206 = vadd.f32 %v180, %v68
    %v207 = vadd.f32 %v182, %v70
    %v208 = vadd.f32 %v184, %v72
    %v209 = vadd.f32 %v186, %v74
    %v210 = vadd.f32 %v188, %v76
    %v211 = vadd.f32 %v190, %v78
    %v212 = vadd.f32 %v192, %v80
    %v213 = vadd.f32 %v194, %v82
    %v214 = vadd.f32 %v196, %v84
    %v215 = vadd.f32 %v198, %v86
    %v216 = vadd.f32 %v200, %v88
    %vm217 = vcmask 7168
    %218 = vst.msk [vmem:[%s1] sm:$0xff] %vm217, %v201
    %219 = vst.msk [vmem:[%s1 + $0x8] sm:$0xff] %vm217, %v202
    %220 = vst.msk [vmem:[%s1 + $0x10] sm:$0xff] %vm217, %v203
    %221 = vst.msk [vmem:[%s1 + $0x18] sm:$0xff] %vm217, %v204
    %222 = vst.msk [vmem:[%s1 + $0x20] sm:$0xff] %vm217, %v205
    %223 = vst.msk [vmem:[%s1 + $0x28] sm:$0xff] %vm217, %v206
    %224 = vst.msk [vmem:[%s1 + $0x30] sm:$0xff] %vm217, %v207
    %225 = vst.msk [vmem:[%s1 + $0x38] sm:$0xff] %vm217, %v208
    %226 = vst.msk [vmem:[%s1 + $0x40] sm:$0xff] %vm217, %v209
    %227 = vst.msk [vmem:[%s1 + $0x48] sm:$0xff] %vm217, %v210
    %228 = vst.msk [vmem:[%s1 + $0x50] sm:$0xff] %vm217, %v211
    %229 = vst.msk [vmem:[%s1 + $0x58] sm:$0xff] %vm217, %v212
    %230 = vst.msk [vmem:[%s1 + $0x60] sm:$0xff] %vm217, %v213
    %231 = vst.msk [vmem:[%s1 + $0x68] sm:$0xff] %vm217, %v214
    %232 = vst.msk [vmem:[%s1 + $0x70] sm:$0xff] %vm217, %v215
    %233 = vst.msk [vmem:[%s1 + $0x78] sm:$0xff] %vm217, %v216
    // Predicated region
    $region10: #{_forward_impl.2} parent=1 // pred_check
      _
    $region11: #{_forward_impl.2} parent=1 // pred_check_branch
      %235 = sbr.rel (0) target = $region13
    $region12: #{_forward_impl.2} parent=1 // pred_region
      _
    $region13: #{_forward_impl.2} parent=1 // pred_fallthru
      _
    // Predicated region
    $region14: #{_forward_impl.2} parent=1 // pred_check
      _
    $region15: #{_forward_impl.2} parent=1 // pred_check_branch
      %237 = sbr.rel (0) target = $region17
    $region16: #{_forward_impl.2} parent=1 // pred_region
      _
    $region17: #{_forward_impl.2} parent=1 // pred_fallthru
      _
    %238 = vsyncpa [#allocation3], 1

// kernel: _forward_impl.3
$region0: #{_forward_impl.3}
  #allocation0 [shape = 'u32[]', space=smem, size = 0x4, offset = 0x4, fixed_abs, tag = 'smem constant byte address 0x4 - core index']
  #allocation1 [shape = 'u32[144,128]{1,0:T(1,128)}', space=vmem, size = 0x12000, scoped, tag = 'internal scratch']
  %s0 = inlined_call_operand.vmem [shape: s32[16,1], index: 0, kind: input, shape index: {}]
  %s1 = inlined_call_operand.vmem [shape: s32[16,1], index: 1, kind: input, shape index: {}]
  %s2 = inlined_call_operand.vmem [shape: f32[128,128], index: 2, kind: input, shape index: {}]
  %s3 = inlined_call_operand.vmem [shape: f32[1,128], index: 3, kind: input, shape index: {}]
  %s4 = inlined_call_operand.hbm [shape: f32[16,128], index: 4, kind: output, shape index: {0}]
  %s5 = inlined_call_operand.vmem [shape: f32[16,1], index: 5, kind: output, shape index: {1}]
  %6 = xla_tuple %s4, %s5
  %s7 = sld [smem:[#allocation0]]
  $region34: #{_forward_impl.3} parent=0
    _
  %s9 = ssub.s32 1, %s7
  %s10 = scalar_select 0, %s9, %s7
  $region1: #{_forward_impl.3} parent=0
    #allocation2 [shape = 'u8[8192]{0}', space=vmem, size = 0x2000, scoped, tag = 'output window, operand 0, single buffered']
    #allocation3 [shape = 's32[1]{0}', space=sflag, size = 0x4, scoped, tag = 'scoped memory for _forward_impl.3']
    %11 = vsyncpa [#allocation3], 0
    // Predicated region
    $region2: #{_forward_impl.3} parent=1 // pred_check
      _
    $region3: #{_forward_impl.3} parent=1 // pred_check_branch
      %13 = sbr.rel (0) target = $region5
    $region4: #{_forward_impl.3} parent=1 // pred_region
      _
    $region5: #{_forward_impl.3} parent=1 // pred_fallthru
      _
    // Predicated region
    $region6: #{_forward_impl.3} parent=1 // pred_check
      _
    $region7: #{_forward_impl.3} parent=1 // pred_check_branch
      %15 = sbr.rel (0) target = $region9
    $region8: #{_forward_impl.3} parent=1 // pred_region
      _
    $region9: #{_forward_impl.3} parent=1 // pred_fallthru
      _
    // Predicated region
    $region10: #{_forward_impl.3} parent=1 // pred_check
      _
    $region11: #{_forward_impl.3} parent=1 // pred_check_branch
      %17 = sbr.rel (0) target = $region13
    $region12: #{_forward_impl.3} parent=1 // pred_region
      _
    $region13: #{_forward_impl.3} parent=1 // pred_fallthru
      _
    // Predicated region
    $region14: #{_forward_impl.3} parent=1 // pred_check
      _
    $region15: #{_forward_impl.3} parent=1 // pred_check_branch
      %19 = sbr.rel (0) target = $region17
    $region16: #{_forward_impl.3} parent=1 // pred_region
      _
    $region17: #{_forward_impl.3} parent=1 // pred_fallthru
      _
    %v20 = vld [vmem:[%s0] sm:$0xff]
    %v21 = vld [vmem:[%s0 + $0x8] sm:$0xff]
    %v22 = vld [vmem:[%s1] sm:$0xff]
    %v23 = vld [vmem:[%s1 + $0x8] sm:$0xff]
    %v24 = vlaneseq
    %v25 = vand.u32 %v24, 127
    %26 = vset.pattern.permute.xlu0 0
    %27 = vperm.xlu0 %26, %v20
    %v28 = vpop.permute.xlu0 %27
    %29 = vset.pattern.permute.xlu0 0
    %30 = vperm.xlu0 %29, %v21
    %v31 = vpop.permute.xlu0 %30
    %vm32 = vcmp.eq.s32.totalorder %v25, %v28
    %vm33 = vcmp.eq.s32.totalorder %v25, %v31
    %v34 = vsel %vm32, 1, 0
    %v35 = vsel %vm33, 1, 0
    %v36 = vcvt.s32.f32 %v34
    %v37 = vcvt.s32.f32 %v35
    %v38 = vld [vmem:[%s2] sm:$0xff]
    %v39 = vld [vmem:[%s2 + $0x8] sm:$0xff]
    %v40 = vld [vmem:[%s2 + $0x10] sm:$0xff]
    %v41 = vld [vmem:[%s2 + $0x18] sm:$0xff]
    %v42 = vld [vmem:[%s2 + $0x20] sm:$0xff]
    %v43 = vld [vmem:[%s2 + $0x28] sm:$0xff]
    %v44 = vld [vmem:[%s2 + $0x30] sm:$0xff]
    %v45 = vld [vmem:[%s2 + $0x38] sm:$0xff]
    %v46 = vld [vmem:[%s2 + $0x40] sm:$0xff]
    %v47 = vld [vmem:[%s2 + $0x48] sm:$0xff]
    %v48 = vld [vmem:[%s2 + $0x50] sm:$0xff]
    %v49 = vld [vmem:[%s2 + $0x58] sm:$0xff]
    %v50 = vld [vmem:[%s2 + $0x60] sm:$0xff]
    %v51 = vld [vmem:[%s2 + $0x68] sm:$0xff]
    %v52 = vld [vmem:[%s2 + $0x70] sm:$0xff]
    %v53 = vld [vmem:[%s2 + $0x78] sm:$0xff]
    %54 = vmatprep.subr.mxu0 0.0
    %55 = vmatpush1.msra.mxu0 %v53
    %56 = vmatprep.subr.mxu0 0.0
    %57 = vmatpush1.msra.mxu0 %v52
    %58 = vmatprep.subr.mxu0 0.0
    %59 = vmatpush1.msra.mxu0 %v51
    %60 = vmatprep.subr.mxu0 0.0
    %61 = vmatpush1.msra.mxu0 %v50
    %62 = vmatprep.subr.mxu0 0.0
    %63 = vmatpush1.msra.mxu0 %v49
    %64 = vmatprep.subr.mxu0 0.0
    %65 = vmatpush1.msra.mxu0 %v48
    %66 = vmatprep.subr.mxu0 0.0
    %67 = vmatpush1.msra.mxu0 %v47
    %68 = vmatprep.subr.mxu0 0.0
    %69 = vmatpush1.msra.mxu0 %v46
    %70 = vmatprep.subr.mxu0 0.0
    %71 = vmatpush1.msra.mxu0 %v45
    %72 = vmatprep.subr.mxu0 0.0
    %73 = vmatpush1.msra.mxu0 %v44
    %74 = vmatprep.subr.mxu0 0.0
    %75 = vmatpush1.msra.mxu0 %v43
    %76 = vmatprep.subr.mxu0 0.0
    %77 = vmatpush1.msra.mxu0 %v42
    %78 = vmatprep.subr.mxu0 0.0
    %79 = vmatpush1.msra.mxu0 %v41
    %80 = vmatprep.subr.mxu0 0.0
    %81 = vmatpush1.msra.mxu0 %v40
    %82 = vmatprep.subr.mxu0 0.0
    %83 = vmatpush1.msra.mxu0 %v39
    %84 = vmatprep.subr.mxu0 0.0
    %85 = vmatpush1.msra.mxu0 %v38
    %86 = vmatprep.subr.mxu0 0.0
    %87 = vmatpush2.msra.mxu0 0.0
    %88 = vmatprep.subr.mxu0 0.0
    %89 = vmatpush2.msra.mxu0 0.0
    %90 = vmatprep.subr.mxu0 0.0
    %91 = vmatpush2.msra.mxu0 0.0
    %92 = vmatprep.subr.mxu0 0.0
    %93 = vmatpush2.msra.mxu0 0.0
    %94 = vmatprep.subr.mxu0 0.0
    %95 = vmatpush2.msra.mxu0 0.0
    %96 = vmatprep.subr.mxu0 0.0
    %97 = vmatpush2.msra.mxu0 0.0
    %98 = vmatprep.subr.mxu0 0.0
    %99 = vmatpush2.msra.mxu0 0.0
    %100 = vmatprep.subr.mxu0 0.0
    %101 = vmatpush2.msra.mxu0 0.0
    %102 = vmatprep.subr.mxu0 0.0
    %103 = vmatpush2.msra.mxu0 0.0
    %104 = vmatprep.subr.mxu0 0.0
    %105 = vmatpush2.msra.mxu0 0.0
    %106 = vmatprep.subr.mxu0 0.0
    %107 = vmatpush2.msra.mxu0 0.0
    %108 = vmatprep.subr.mxu0 0.0
    %109 = vmatpush2.msra.mxu0 0.0
    %110 = vmatprep.subr.mxu0 0.0
    %111 = vmatpush2.msra.mxu0 0.0
    %112 = vmatprep.subr.mxu0 0.0
    %113 = vmatpush2.msra.mxu0 0.0
    %114 = vmatprep.subr.mxu0 0.0
    %115 = vmatpush2.msra.mxu0 0.0
    %116 = vmatprep.subr.mxu0 0.0
    %117 = vmatpush2.msra.mxu0 0.0
    %118 = vmatprep.mubr.f32.mxu0 0.0
    %119 = vmatmul.mubr.f32.gmra.mxu0 %v36
    %v120 = vpop.f32.mrf.mxu0
    %v121 = vadd.f32 0.0, %v120
    %v122 = vpop.f32.mrf.mxu0
    %123 = vmatprep.mubr.f32.mxu0 0.0
    %124 = vmatmul.mubr.f32.gmra.mxu0 %v37
    %v125 = vpop.f32.mrf.mxu0
    %v126 = vadd.f32 0.0, %v125
    %v127 = vpop.f32.mrf.mxu0
    %128 = vdwg.mxu0
    %129 = vst [vmem:[#allocation2] sm:$0xff] %v121
    %130 = vst [vmem:[#allocation2 + $0x8] sm:$0xff] %v126
    %v131 = vld [vmem:[%s3] sm:$0x1]
    %v133 = vlaneseq
    %v134 = vshrl.u32 %v133, 7
    %v135 = vsub.s32 0, %v134
    %v136 = vrot.slane %v131, %v135
    %v138 = vsel %vm32, %v136, 0.0
    %v139 = vsel %vm33, %v136, 0.0
    %140 = vadd.xlane.f32.xlu0 %v138
    %v141 = vpop.xlane.xlu0 %140
    %142 = vadd.xlane.f32.xlu0 %v139
    %v143 = vpop.xlane.xlu0 %142
    %144 = vset.pattern.permute.xlu0 0
    %145 = vperm.xlu0 %144, %v22
    %v146 = vpop.permute.xlu0 %145
    %147 = vset.pattern.permute.xlu0 0
    %148 = vperm.xlu0 %147, %v23
    %v149 = vpop.permute.xlu0 %148
    %vm150 = vcmp.eq.s32.totalorder %v25, %v146
    %vm151 = vcmp.eq.s32.totalorder %v25, %v149
    %v152 = vsel %vm150, %v121, 0.0
    %v153 = vsel %vm151, %v126, 0.0
    %154 = vadd.xlane.f32.xlu0 %v152
    %v155 = vpop.xlane.xlu0 %154
    %156 = vadd.xlane.f32.xlu0 %v153
    %v157 = vpop.xlane.xlu0 %156
    %s158 = smul.u32 0, 16
    %v159 = vlaneseq
    %v160 = vshrl.u32 %v159, 7
    %v161 = vadd.s32 %v160, 8
    %v162 = vstv %s158
    %v163 = vadd.s32 %v162, %v160
    %v164 = vadd.s32 %v162, %v161
    %vm165 = vcmp.lt.s32.totalorder %v163, 16
    %vm166 = vcmp.lt.s32.totalorder %v164, 16
    %v167 = vsub.f32 %v141, %v155
    %v168 = vsub.f32 %v143, %v157
    %v169 = vsel %vm165, %v167, 0.0
    %v170 = vsel %vm166, %v168, 0.0
    %vm171 = vcmask 7168
    %172 = vst.msk [vmem:[%s5] sm:$0xff] %vm171, %v169
    %173 = vst.msk [vmem:[%s5 + $0x8] sm:$0xff] %vm171, %v170
    // Predicated region
    $region18: #{_forward_impl.3} parent=1 // pred_check
      _
    $region19: #{_forward_impl.3} parent=1 // pred_check_branch
      %175 = sbr.rel (0) target = $region21
    $region20: #{_forward_impl.3} parent=1 // pred_region
      %s177 = ssub.s32 256, 256
      %178 = vsyncadd [#allocation3], %s177
      %s179 = sshll.u32 [#allocation2], 4
      %s180 = int_to_ptr.vmem [resolvable:$true] %s179
      %185 = dma.vmem_to_hbm [thread:$0]  %s180, 256, %s4, [#allocation3], 128, 128, 8
    $region21: #{_forward_impl.3} parent=1 // pred_fallthru
      _
    // Predicated region
    $region22: #{_forward_impl.3} parent=1 // pred_check
      _
    $region23: #{_forward_impl.3} parent=1 // pred_check_branch
      %187 = sbr.rel (0) target = $region25
    $region24: #{_forward_impl.3} parent=1 // pred_region
      _
    $region25: #{_forward_impl.3} parent=1 // pred_fallthru
      _
    // Predicated region
    $region26: #{_forward_impl.3} parent=1 // pred_check
      _
    $region27: #{_forward_impl.3} parent=1 // pred_check_branch
      %189 = sbr.rel (0) target = $region29
    $region28: #{_forward_impl.3} parent=1 // pred_region
      %190 = dma.done [#allocation3], 256
    $region29: #{_forward_impl.3} parent=1 // pred_fallthru
      _
    // Predicated region
    $region30: #{_forward_impl.3} parent=1 // pred_check
      _
    $region31: #{_forward_impl.3} parent=1 // pred_check_branch
      %192 = sbr.rel (0) target = $region33
    $region32: #{_forward_impl.3} parent=1 // pred_region
      _
    $region33: #{_forward_impl.3} parent=1 // pred_fallthru
      _
    %193 = vsyncpa [#allocation3], 1

</llo_original>
